<compile_context>
chip_gen: v5e
topology: v5e:2x2
jax: 0.10.0
libtpu: 0.0.40
codegen_flags: <defaults>
</compile_context>

<pallas_src>
import functools
import math

import jax
import jax.numpy as jnp
from jax.experimental import pallas as pl
from jax.experimental.pallas import tpu as pltpu


def _round_up(x, m):
    return ((x + m - 1) // m) * m


def _policy_kernel(action_dim, *refs):
    """refs = [state, W_0, b_0, W_1, b_1, ..., W_{L-1}, b_{L-1}, out].

    W_i: (in_i, out_i) in the weight dtype (f32 or bf16), b_i: (1, out_i) f32.
    The last layer is the fused, 128-lane-padded head producing [mu | log_sigma | pad]."""
    state_ref, out_ref = refs[0], refs[-1]
    param_refs = refs[1:-1]
    n_layers = len(param_refs) // 2

    # One cast of the batch tile into the weight dtype; activations then stay in that
    # dtype between trunk layers (bias-add / ReLU / epilogue stay f32).
    x = state_ref[...].astype(param_refs[0].dtype)
    for li in range(n_layers):
        w_ref = param_refs[2 * li]
        b_ref = param_refs[2 * li + 1]
        y = jnp.dot(x, w_ref[...], preferred_element_type=jnp.float32) + b_ref[...]
        if li < n_layers - 1:
            x = jnp.maximum(y, 0.0).astype(w_ref.dtype)          # trunk ReLU
        else:
            # Fused head: cols [0:A) = mu, [A:2A) = log_sigma, [2A:128) = zero pad.
            # exp(clip(.)) is computed full-width (EUP slot, bounded by e^2) and lane-
            # selected -> one unmasked full-width (tb, 128) store.
            cols = jax.lax.broadcasted_iota(jnp.int32, y.shape, 1)
            sig = jnp.exp(jnp.clip(y, -20.0, 2.0))
            out_ref[...] = jnp.where(cols < action_dim, y, sig).astype(out_ref.dtype)


def prepare_policy_params(params, *, weight_dtype=None):
    """One-time packing of parameters (call OUTSIDE the hot forward path).

    params: dict with 'trunk' = [(W, b), ...] (input + hidden layers),
    'mu' = (W, b), 'log_sigma' = (W, b); weights are (in_features, out_features).

    Fuses the mu / log_sigma heads into one linear layer, zero-pads the fused head to a
    128-lane-aligned output width, optionally casts weights to weight_dtype (e.g. bf16 on
    v6e/v7x), and keeps all biases as f32 (1, out) rows."""
    w_mu, b_mu = params["mu"]
    w_ls, b_ls = params["log_sigma"]
    action_dim = w_mu.shape[1]

    head_w = jnp.concatenate([w_mu, w_ls], axis=1)            # (H, 2A)
    head_b = jnp.concatenate([b_mu, b_ls], axis=0)            # (2A,)
    out_w = max(128, _round_up(2 * action_dim, 128))          # lane-dense output width
    pad = out_w - 2 * action_dim
    head_w = jnp.pad(head_w, ((0, 0), (0, pad)))
    head_b = jnp.pad(head_b, ((0, pad),))

    layers = list(params["trunk"]) + [(head_w, head_b)]
    weights, biases = [], []
    for w, b in layers:
        weights.append(w.astype(weight_dtype) if weight_dtype is not None else w)
        biases.append(b.reshape(1, -1).astype(jnp.float32))
    return {
        "weights": tuple(weights),
        "biases": tuple(biases),
        "action_dim": int(action_dim),
        "out_w": int(out_w),
    }


def gaussian_policy_forward(state, prepared, *, block_batch=1024):
    """state: (B, state_dim) f32.  prepared: output of prepare_policy_params.
    Returns (mu, sigma), each (B, action_dim) f32."""
    weights, biases = prepared["weights"], prepared["biases"]
    action_dim = prepared["action_dim"]
    out_w = prepared["out_w"]
    batch, state_dim = state.shape

    # Batch tiling: no padding of state; grid = cdiv(B, tb), ragged last block handled
    # by Pallas (garbage OOB reads are discarded, OOB writes masked).  Mid-size batches
    # get >= 2 grid steps so v7x's two TensorCores both run ("parallel" grid axis).
    block_batch = max(8, (block_batch // 8) * 8)
    if batch <= 8:
        tb = batch                                             # single full-dim block
    elif batch <= 2 * block_batch:
        tb = min(_round_up(pl.cdiv(batch, 2), 8), block_batch)  # ~2 balanced steps
    else:
        tb = block_batch
    grid = (pl.cdiv(batch, tb),)

    in_specs = [pl.BlockSpec((tb, state_dim), lambda i: (i, 0))]
    param_args = []
    for w, b in zip(weights, biases):
        # Constant index_map -> each weight/bias DMA'd once, VMEM-resident across steps.
        in_specs.append(pl.BlockSpec(w.shape, lambda i: (0, 0)))
        in_specs.append(pl.BlockSpec(b.shape, lambda i: (0, 0)))
        param_args += [w, b]
    out_spec = pl.BlockSpec((tb, out_w), lambda i: (i, 0))

    flops = 2 * batch * sum(int(w.shape[0]) * int(w.shape[1]) for w in weights)
    bytes_accessed = (int(state.size) * state.dtype.itemsize
                      + sum(int(w.size) * w.dtype.itemsize for w in weights)
                      + sum(int(b.size) * 4 for b in biases)
                      + batch * out_w * 4)

    out = pl.pallas_call(
        functools.partial(_policy_kernel, action_dim),
        out_shape=jax.ShapeDtypeStruct((batch, out_w), jnp.float32),
        grid=grid,
        in_specs=in_specs,
        out_specs=out_spec,
        compiler_params=pltpu.CompilerParams(dimension_semantics=("parallel",)),
        cost_estimate=pl.CostEstimate(
            flops=flops,
            transcendentals=batch * out_w,
            bytes_accessed=int(bytes_accessed)),
    )(state, *param_args)

    mu = out[:, :action_dim]
    sigma = out[:, action_dim:2 * action_dim]
    return mu, sigma


def init_gaussian_policy_params(key, state_dim, action_dim, hidden_dims=(128,)):
    """nn.Linear-style init: U(-1/sqrt(fan_in), 1/sqrt(fan_in)); W stored as (in, out)."""
    def linear_init(k, fan_in, fan_out):
        kw, kb = jax.random.split(k)
        bound = 1.0 / math.sqrt(fan_in)
        w = jax.random.uniform(kw, (fan_in, fan_out), jnp.float32, -bound, bound)
        b = jax.random.uniform(kb, (fan_out,), jnp.float32, -bound, bound)
        return w, b

    keys = jax.random.split(key, len(hidden_dims) + 2)
    dims = (state_dim,) + tuple(hidden_dims)
    trunk = [linear_init(keys[i], dims[i], dims[i + 1]) for i in range(len(hidden_dims))]
    mu = linear_init(keys[len(hidden_dims)], hidden_dims[-1], action_dim)
    log_sigma = linear_init(keys[len(hidden_dims) + 1], hidden_dims[-1], action_dim)
    return {"trunk": trunk, "mu": mu, "log_sigma": log_sigma}


def _reference_forward(state, params, weight_dtype=None):
    """Pure-JAX reference mirroring the kernel's dtype handling (f32 bias, f32 epilogue)."""
    def lin(x, w, b):
        if weight_dtype is not None:
            x = x.astype(weight_dtype)
            w = w.astype(weight_dtype)
        return (jnp.dot(x, w, preferred_element_type=jnp.float32,
                        precision=jax.lax.Precision.HIGHEST)
                + b.astype(jnp.float32))

    x = state.astype(jnp.float32)
    for w, b in params["trunk"]:
        x = jnp.maximum(lin(x, w, b), 0.0)
    w_mu, b_mu = params["mu"]
    w_ls, b_ls = params["log_sigma"]
    mu = lin(x, w_mu, b_mu)
    log_sigma = jnp.clip(lin(x, w_ls, b_ls), -20.0, 2.0)
    return mu, jnp.exp(log_sigma)


if __name__ == "__main__":
    key = jax.random.PRNGKey(0)
    k1, k2, k3, k4, k5 = jax.random.split(key, 5)

    # --- Test 1: tiny batch, f32 weights, single-block path (tb == B == 4) ---
    batch, state_dim, action_dim = 4, 16, 6
    params = init_gaussian_policy_params(k1, state_dim, action_dim, hidden_dims=(32,))
    prepared = prepare_policy_params(params)                 # pack once, off hot path
    state = jax.random.normal(k2, (batch, state_dim), jnp.float32)

    mu, sigma = gaussian_policy_forward(state, prepared)
    jax.block_until_ready((mu, sigma))
    mu_ref, sigma_ref = _reference_forward(state, params)
    assert mu.shape == (batch, action_dim) and sigma.shape == (batch, action_dim)
    assert jnp.allclose(mu, mu_ref, atol=1e-4, rtol=1e-4)
    assert jnp.allclose(sigma, sigma_ref, atol=1e-4, rtol=1e-4)

    # --- Test 2: mid-size batch -> 2 balanced grid steps (v7x megacore split),
    #             ragged last block (no wrapper-side padding of state) ---
    batch_b = 20
    state_b = jax.random.normal(k3, (batch_b, state_dim), jnp.float32)
    mu_b, sigma_b = gaussian_policy_forward(state_b, prepared)
    jax.block_until_ready((mu_b, sigma_b))
    mu_b_ref, sigma_b_ref = _reference_forward(state_b, params)
    assert jnp.allclose(mu_b, mu_b_ref, atol=1e-4, rtol=1e-4)
    assert jnp.allclose(sigma_b, sigma_b_ref, atol=1e-4, rtol=1e-4)

    # --- Test 3: larger batch, multi-step grid with ragged tail, two trunk layers,
    #             bf16 weights on the MXU with f32 bias / epilogue ---
    batch2, state_dim2, action_dim2 = 300, 24, 8
    params2 = init_gaussian_policy_params(k4, state_dim2, action_dim2,
                                          hidden_dims=(128, 64))
    prepared2 = prepare_policy_params(params2, weight_dtype=jnp.bfloat16)
    state2 = jax.random.normal(k5, (batch2, state_dim2), jnp.float32)

    mu2, sigma2 = gaussian_policy_forward(state2, prepared2, block_batch=128)
    jax.block_until_ready((mu2, sigma2))
    mu2_ref, sigma2_ref = _reference_forward(state2, params2, weight_dtype=jnp.bfloat16)
    assert mu2.shape == (batch2, action_dim2) and sigma2.shape == (batch2, action_dim2)
    assert jnp.allclose(mu2, mu2_ref, atol=2e-3, rtol=2e-3)
    assert jnp.allclose(sigma2, sigma2_ref, atol=2e-3, rtol=2e-3)

    print("KERNEL_OK")
</pallas_src>

<mosaic_0001>
module attributes {stable_mosaic.version = 11 : i64} {
  func.func @_policy_kernel(%arg0: i32, %arg1: memref<4x16xf32, #tpu.memory_space<vmem>>, %arg2: memref<16x32xf32, #tpu.memory_space<vmem>>, %arg3: memref<1x32xf32, #tpu.memory_space<vmem>>, %arg4: memref<32x128xf32, #tpu.memory_space<vmem>>, %arg5: memref<1x128xf32, #tpu.memory_space<vmem>>, %arg6: memref<4x128xf32, #tpu.memory_space<vmem>>) attributes {dimension_semantics = [#tpu.dimension_semantics<parallel>], iteration_bounds = array<i64: 1>, scalar_prefetch = 0 : i64, scratch_operands = 0 : i64, tpu.core_type = #tpu.core_type<tc>, window_params = [{transform_indices = @transform_0, window_bounds = array<i64: 4, 16>}, {pipeline_mode = #tpu.pipeline_mode<synchronous>, transform_indices = @transform_1, window_bounds = array<i64: 16, 32>}, {pipeline_mode = #tpu.pipeline_mode<synchronous>, transform_indices = @transform_2, window_bounds = array<i64: 1, 32>}, {pipeline_mode = #tpu.pipeline_mode<synchronous>, transform_indices = @transform_3, window_bounds = array<i64: 32, 128>}, {pipeline_mode = #tpu.pipeline_mode<synchronous>, transform_indices = @transform_4, window_bounds = array<i64: 1, 128>}, {transform_indices = @transform_5, window_bounds = array<i64: 4, 128>}]} {
    %c0 = arith.constant 0 : index
    %c0_0 = arith.constant 0 : index
    %0 = vector.load %arg1[%c0, %c0_0] : memref<4x16xf32, #tpu.memory_space<vmem>>, vector<4x16xf32>
    %c0_1 = arith.constant 0 : index
    %c0_2 = arith.constant 0 : index
    %1 = vector.load %arg2[%c0_1, %c0_2] : memref<16x32xf32, #tpu.memory_space<vmem>>, vector<16x32xf32>
    %cst = arith.constant dense<0.000000e+00> : vector<4x32xf32>
    %2 = tpu.matmul %0, %1, %cst {dimension_numbers = #tpu.dot_dimension_numbers<[1], [0], [0], [1], [0, 0, 1, 1], [], []>} : vector<4x16xf32>, vector<16x32xf32>, vector<4x32xf32> -> vector<4x32xf32>
    %c0_3 = arith.constant 0 : index
    %c0_4 = arith.constant 0 : index
    %3 = vector.load %arg3[%c0_3, %c0_4] : memref<1x32xf32, #tpu.memory_space<vmem>>, vector<1x32xf32>
    %4 = vector.broadcast %3 : vector<1x32xf32> to vector<4x32xf32>
    %5 = arith.addf %2, %4 : vector<4x32xf32>
    %cst_5 = arith.constant 0.000000e+00 : f32
    %6 = vector.broadcast %cst_5 : f32 to vector<4x32xf32>
    %7 = arith.maximumf %5, %6 : vector<4x32xf32>
    %c0_6 = arith.constant 0 : index
    %c0_7 = arith.constant 0 : index
    %8 = vector.load %arg4[%c0_6, %c0_7] : memref<32x128xf32, #tpu.memory_space<vmem>>, vector<32x128xf32>
    %cst_8 = arith.constant dense<0.000000e+00> : vector<4x128xf32>
    %9 = tpu.matmul %7, %8, %cst_8 {dimension_numbers = #tpu.dot_dimension_numbers<[1], [0], [0], [1], [0, 0, 1, 1], [], []>} : vector<4x32xf32>, vector<32x128xf32>, vector<4x128xf32> -> vector<4x128xf32>
    %c0_9 = arith.constant 0 : index
    %c0_10 = arith.constant 0 : index
    %10 = vector.load %arg5[%c0_9, %c0_10] : memref<1x128xf32, #tpu.memory_space<vmem>>, vector<1x128xf32>
    %11 = vector.broadcast %10 : vector<1x128xf32> to vector<4x128xf32>
    %12 = arith.addf %9, %11 : vector<4x128xf32>
    %13 = tpu.iota {dimensions = array<i32: 1>} : vector<4x128xi32>
    %cst_11 = arith.constant -2.000000e+01 : f32
    %cst_12 = arith.constant 2.000000e+00 : f32
    %14 = vector.broadcast %cst_11 : f32 to vector<4x128xf32>
    %15 = arith.maximumf %14, %12 : vector<4x128xf32>
    %16 = vector.broadcast %cst_12 : f32 to vector<4x128xf32>
    %17 = arith.minimumf %16, %15 : vector<4x128xf32>
    %18 = math.exp %17 : vector<4x128xf32>
    %c6_i32 = arith.constant 6 : i32
    %19 = vector.broadcast %c6_i32 : i32 to vector<4x128xi32>
    %20 = arith.cmpi slt, %13, %19 : vector<4x128xi32>
    %21 = arith.select %20, %12, %18 : vector<4x128xi1>, vector<4x128xf32>
    %c0_13 = arith.constant 0 : index
    %c0_14 = arith.constant 0 : index
    %22 = vector.load %arg6[%c0_13, %c0_14] : memref<4x128xf32, #tpu.memory_space<vmem>>, vector<4x128xf32>
    tpu.vector_store %arg6[%c0_13, %c0_14], %21 {strides = array<i32>} : memref<4x128xf32, #tpu.memory_space<vmem>>, vector<4x128xf32>,
    return
  }
  func.func @transform_0(%arg0: i32) -> (i32, i32) {
    %c0_i32 = arith.constant 0 : i32
    %c0_i32_0 = arith.constant 0 : i32
    return %arg0, %c0_i32 : i32, i32
  }
  func.func @transform_1(%arg0: i32) -> (i32, i32) {
    %c0_i32 = arith.constant 0 : i32
    %c0_i32_0 = arith.constant 0 : i32
    %c0_i32_1 = arith.constant 0 : i32
    return %c0_i32, %c0_i32_0 : i32, i32
  }
  func.func @transform_2(%arg0: i32) -> (i32, i32) {
    %c0_i32 = arith.constant 0 : i32
    %c0_i32_0 = arith.constant 0 : i32
    %c0_i32_1 = arith.constant 0 : i32
    return %c0_i32, %c0_i32_0 : i32, i32
  }
  func.func @transform_3(%arg0: i32) -> (i32, i32) {
    %c0_i32 = arith.constant 0 : i32
    %c0_i32_0 = arith.constant 0 : i32
    %c0_i32_1 = arith.constant 0 : i32
    return %c0_i32, %c0_i32_0 : i32, i32
  }
  func.func @transform_4(%arg0: i32) -> (i32, i32) {
    %c0_i32 = arith.constant 0 : i32
    %c0_i32_0 = arith.constant 0 : i32
    %c0_i32_1 = arith.constant 0 : i32
    return %c0_i32, %c0_i32_0 : i32, i32
  }
  func.func @transform_5(%arg0: i32) -> (i32, i32) {
    %c0_i32 = arith.constant 0 : i32
    %c0_i32_0 = arith.constant 0 : i32
    return %arg0, %c0_i32 : i32, i32
  }
}

</mosaic_0001>

<llo_original>
// kernel: tpu_custom_call.1
$region0: #{tpu_custom_call.1}
  #allocation0 [shape = 'u32[]', space=smem, size = 0x4, offset = 0x4, fixed_abs, tag = 'smem constant byte address 0x4 - core index']
  #allocation1 [shape = 'u32[72,128]{1,0:T(1,128)}', space=vmem, size = 0x9000, scoped, tag = 'internal scratch']
  %s0 = inlined_call_operand.hbm [shape: f32[4,16], index: 0, kind: input, shape index: {}]
  %s1 = inlined_call_operand.hbm [shape: f32[16,32], index: 1, kind: input, shape index: {}]
  %s2 = inlined_call_operand.vmem [shape: f32[1,32], index: 2, kind: input, shape index: {}]
  %s3 = inlined_call_operand.hbm [shape: f32[32,128], index: 3, kind: input, shape index: {}]
  %s4 = inlined_call_operand.vmem [shape: f32[1,128], index: 4, kind: input, shape index: {}]
  %s5 = inlined_call_operand.hbm [shape: f32[4,128], index: 5, kind: output, shape index: {}]
  %s6 = sld [smem:[#allocation0]]
  $region42: #{tpu_custom_call.1} parent=0
    _
  %s8 = ssub.s32 1, %s6
  %s9 = scalar_select 0, %s8, %s6
  $region1: #{tpu_custom_call.1} parent=0
    #allocation2 [shape = 'u8[2048]{0}', space=vmem, size = 0x800, scoped, tag = 'input window, operand 0, single buffered']
    #allocation3 [shape = 's32[1]{0}', space=sflag, size = 0x4, scoped, tag = 'scoped memory for tpu_custom_call.1']
    #allocation4 [shape = 's32[1]{0}', space=sflag, size = 0x4, scoped, tag = 'scoped memory for tpu_custom_call.1']
    #allocation5 [shape = 'u8[8192]{0}', space=vmem, size = 0x2000, scoped, tag = 'input window, operand 1, single buffered']
    #allocation6 [shape = 's32[1]{0}', space=sflag, size = 0x4, scoped, tag = 'scoped memory for tpu_custom_call.1']
    #allocation7 [shape = 'u8[16384]{0}', space=vmem, size = 0x4000, scoped, tag = 'input window, operand 3, single buffered']
    #allocation8 [shape = 'u8[2048]{0}', space=vmem, size = 0x800, scoped, tag = 'output window, operand 0, single buffered']
    %10 = vsyncpa [#allocation3], 0
    %11 = vsyncpa [#allocation6], 0
    %12 = vsyncpa [#allocation4], 0
    // Predicated region
    $region2: #{tpu_custom_call.1} parent=1 // pred_check
      _
    $region3: #{tpu_custom_call.1} parent=1 // pred_check_branch
      %14 = sbr.rel (0) target = $region5
    $region4: #{tpu_custom_call.1} parent=1 // pred_region
      %16 = vsyncadd [#allocation3], 0
      %s18 = sshll.u32 %s0, 4
      %s19 = int_to_ptr.hbm [resolvable:$true] %s18
      %s20 = sshll.u32 [#allocation2], 4
      %s21 = int_to_ptr.vmem [resolvable:$true] %s20
      %23 = dma.hbm_to_vmem [thread:$0]  %s19, 64, %s21, [#allocation3]
    $region5: #{tpu_custom_call.1} parent=1 // pred_fallthru
      _
    // Predicated region
    $region6: #{tpu_custom_call.1} parent=1 // pred_check
      _
    $region7: #{tpu_custom_call.1} parent=1 // pred_check_branch
      %25 = sbr.rel (0) target = $region9
    $region8: #{tpu_custom_call.1} parent=1 // pred_region
      %27 = vsyncadd [#allocation6], 0
      %s28 = sshll.u32 %s1, 4
      %s29 = int_to_ptr.hbm [resolvable:$true] %s28
      %s30 = sshll.u32 [#allocation5], 4
      %s31 = int_to_ptr.vmem [resolvable:$true] %s30
      %36 = dma.hbm_to_vmem [thread:$0]  %s29, 256, %s31, [#allocation6], 128, 128, 8
    $region9: #{tpu_custom_call.1} parent=1 // pred_fallthru
      _
    // Predicated region
    $region10: #{tpu_custom_call.1} parent=1 // pred_check
      _
    $region11: #{tpu_custom_call.1} parent=1 // pred_check_branch
      %38 = sbr.rel (0) target = $region13
    $region12: #{tpu_custom_call.1} parent=1 // pred_region
      _
    $region13: #{tpu_custom_call.1} parent=1 // pred_fallthru
      _
    // Predicated region
    $region14: #{tpu_custom_call.1} parent=1 // pred_check
      _
    $region15: #{tpu_custom_call.1} parent=1 // pred_check_branch
      %40 = sbr.rel (0) target = $region17
    $region16: #{tpu_custom_call.1} parent=1 // pred_region
      %42 = vsyncadd [#allocation6], 0
      %s43 = sshll.u32 %s3, 4
      %s44 = int_to_ptr.hbm [resolvable:$true] %s43
      %s45 = sshll.u32 [#allocation7], 4
      %s46 = int_to_ptr.vmem [resolvable:$true] %s45
      %51 = dma.hbm_to_vmem [thread:$0]  %s44, 512, %s46, [#allocation6], 128, 128, 8
    $region17: #{tpu_custom_call.1} parent=1 // pred_fallthru
      _
    // Predicated region
    $region18: #{tpu_custom_call.1} parent=1 // pred_check
      _
    $region19: #{tpu_custom_call.1} parent=1 // pred_check_branch
      %53 = sbr.rel (0) target = $region21
    $region20: #{tpu_custom_call.1} parent=1 // pred_region
      _
    $region21: #{tpu_custom_call.1} parent=1 // pred_fallthru
      _
    // Predicated region
    $region22: #{tpu_custom_call.1} parent=1 // pred_check
      _
    $region23: #{tpu_custom_call.1} parent=1 // pred_check_branch
      %55 = sbr.rel (0) target = $region25
    $region24: #{tpu_custom_call.1} parent=1 // pred_region
      %57 = dma.done [#allocation3], 64
    $region25: #{tpu_custom_call.1} parent=1 // pred_fallthru
      _
    // Predicated region
    $region26: #{tpu_custom_call.1} parent=1 // pred_check
      _
    $region27: #{tpu_custom_call.1} parent=1 // pred_check_branch
      %59 = sbr.rel (0) target = $region29
    $region28: #{tpu_custom_call.1} parent=1 // pred_region
      %61 = dma.done [#allocation6], 256
    $region29: #{tpu_custom_call.1} parent=1 // pred_fallthru
      _
    // Predicated region
    $region30: #{tpu_custom_call.1} parent=1 // pred_check
      _
    $region31: #{tpu_custom_call.1} parent=1 // pred_check_branch
      %63 = sbr.rel (0) target = $region33
    $region32: #{tpu_custom_call.1} parent=1 // pred_region
      %65 = dma.done [#allocation6], 512
    $region33: #{tpu_custom_call.1} parent=1 // pred_fallthru
      _
    %v66 = vld [vmem:[#allocation2] sm:$0xf]
    %v67 = vld [vmem:[#allocation5] sm:$0xff]
    %v68 = vld [vmem:[#allocation5 + $0x8] sm:$0xff]
    %v69 = vld [vmem:[%s2] sm:$0x1]
    %v71 = vperm.slane %v69, 0
    %vm73 = vcmask 130048
    %v75 = vsel %vm73, %v66, 0
    %77 = vmatpush.msra.mxu0 0.0
    %78 = vmatpush.msra.mxu0 0.0
    %79 = vmatpush.msra.mxu0 0.0
    %80 = vmatpush.msra.mxu0 0.0
    %81 = vmatpush.msra.mxu0 0.0
    %82 = vmatpush.msra.mxu0 0.0
    %83 = vmatpush.msra.mxu0 0.0
    %84 = vmatpush.msra.mxu0 0.0
    %85 = vmatpush.msra.mxu0 0.0
    %86 = vmatpush.msra.mxu0 0.0
    %87 = vmatpush.msra.mxu0 0.0
    %88 = vmatpush.msra.mxu0 0.0
    %89 = vmatpush.msra.mxu0 0.0
    %90 = vmatpush.msra.mxu0 0.0
    %91 = vmatpush.msra.mxu0 %v68
    %92 = vmatpush.msra.mxu0 %v67
    %93 = vmatmul.f32.gmra.mxu0 %v75
    %v94 = vpop.f32.mrf.mxu0
    %v95 = vadd.f32 %v71, %v94
    %96 = vdwg.mxu0
    %v97 = vmax.f32 %v95, 0.0
    %v98 = vld [vmem:[#allocation7] sm:$0xff]
    %v99 = vld [vmem:[#allocation7 + $0x8] sm:$0xff]
    %v100 = vld [vmem:[#allocation7 + $0x10] sm:$0xff]
    %v101 = vld [vmem:[#allocation7 + $0x18] sm:$0xff]
    %v102 = vld [vmem:[%s4] sm:$0x1]
    %v104 = vperm.slane %v102, 0
    %vm106 = vcmask 261120
    %v108 = vsel %vm106, %v97, 0
    %110 = vmatpush.msra.mxu0 0.0
    %111 = vmatpush.msra.mxu0 0.0
    %112 = vmatpush.msra.mxu0 0.0
    %113 = vmatpush.msra.mxu0 0.0
    %114 = vmatpush.msra.mxu0 0.0
    %115 = vmatpush.msra.mxu0 0.0
    %116 = vmatpush.msra.mxu0 0.0
    %117 = vmatpush.msra.mxu0 0.0
    %118 = vmatpush.msra.mxu0 0.0
    %119 = vmatpush.msra.mxu0 0.0
    %120 = vmatpush.msra.mxu0 0.0
    %121 = vmatpush.msra.mxu0 0.0
    %122 = vmatpush.msra.mxu0 %v101
    %123 = vmatpush.msra.mxu0 %v100
    %124 = vmatpush.msra.mxu0 %v99
    %125 = vmatpush.msra.mxu0 %v98
    %126 = vmatmul.f32.gmra.mxu0 %v108
    %v127 = vpop.f32.mrf.mxu0
    %v128 = vadd.f32 %v104, %v127
    %129 = vdwg.mxu0
    %v130 = vlaneseq
    %v131 = vand.u32 %v130, 127
    %v132 = vmax.f32 %v128, -20.0
    %v133 = vmin.f32 %v132, 2.0
    %v134 = vmul.f32 %v133, 1.442695
    %v135 = vpow.pop %v134
    %vm136 = vcmp.lt.s32.totalorder %v131, 6
    %v137 = vsel %vm136, %v128, %v135
    %138 = vst [vmem:[#allocation8] sm:$0xf] %v137
    // Predicated region
    $region34: #{tpu_custom_call.1} parent=1 // pred_check
      _
    $region35: #{tpu_custom_call.1} parent=1 // pred_check_branch
      %140 = sbr.rel (0) target = $region37
    $region36: #{tpu_custom_call.1} parent=1 // pred_region
      %142 = vsyncadd [#allocation4], 0
      %s144 = sshll.u32 [#allocation8], 4
      %s145 = int_to_ptr.vmem [resolvable:$true] %s144
      %s146 = sshll.u32 %s5, 4
      %s147 = int_to_ptr.hbm [resolvable:$true] %s146
      %149 = dma.vmem_to_hbm [thread:$0]  %s145, 64, %s147, [#allocation4]
    $region37: #{tpu_custom_call.1} parent=1 // pred_fallthru
      _
    // Predicated region
    $region38: #{tpu_custom_call.1} parent=1 // pred_check
      _
    $region39: #{tpu_custom_call.1} parent=1 // pred_check_branch
      %151 = sbr.rel (0) target = $region41
    $region40: #{tpu_custom_call.1} parent=1 // pred_region
      %153 = dma.done [#allocation4], 64
    $region41: #{tpu_custom_call.1} parent=1 // pred_fallthru
      _
    %154 = vsyncpa [#allocation3], 1
    %155 = vsyncpa [#allocation6], 1
    %156 = vsyncpa [#allocation4], 1

</llo_original>
